<compile_context>
chip_gen: v7x
topology: tpu7x:2x2x1
jax: 0.10.0
libtpu: 0.0.40
codegen_flags: <defaults>
</compile_context>

<pallas_src>
import functools
import math

import jax
import jax.numpy as jnp
from jax.experimental import pallas as pl
from jax.experimental.pallas import tpu as pltpu


# ----------------------------------------------------------------------------
# Fused ResBlock-stack kernel: one grid step == one ResBlock
# ----------------------------------------------------------------------------
def _resblock_stack_kernel(x_ref, w1_ref, bn1_ref, w2_ref, bn2_ref,
                           o_ref, act_ref, *, eps):
    l = pl.program_id(0)

    @pl.when(l == 0)
    def _():
        act_ref[...] = x_ref[...]

    x = act_ref[...]                                       # (B, D) block input / residual

    # ---- fc1 (bias dropped: cancels under training-mode BN mean subtraction)
    h = jnp.dot(x, w1_ref[...], preferred_element_type=jnp.float32)   # (B, H)

    # ---- bn1 (per-batch stats, biased variance), gamma folded into scale, relu
    mu1 = jnp.mean(h, axis=0, keepdims=True)
    d1 = h - mu1
    var1 = jnp.mean(d1 * d1, axis=0, keepdims=True)
    s1 = bn1_ref[0:1, :] * jax.lax.rsqrt(var1 + eps)       # (1, H) gamma*rsqrt
    h = jnp.maximum(d1 * s1 + bn1_ref[1:2, :], 0.0)        # + beta, relu

    # ---- fc2 (bias dropped for the same reason)
    y = jnp.dot(h, w2_ref[...], preferred_element_type=jnp.float32)   # (B, D)

    # ---- bn2 + residual + relu
    mu2 = jnp.mean(y, axis=0, keepdims=True)
    d2 = y - mu2
    var2 = jnp.mean(d2 * d2, axis=0, keepdims=True)
    s2 = bn2_ref[0:1, :] * jax.lax.rsqrt(var2 + eps)       # (1, D)
    out = jnp.maximum(d2 * s2 + bn2_ref[1:2, :] + x, 0.0)

    act_ref[...] = out                                     # carry to next layer

    @pl.when(l == pl.num_programs(0) - 1)
    def _():
        o_ref[...] = out


def resblock_stack_forward(x, params, eps=1e-5):
    """Apply L fused ResBlocks.  x: (B, D) f32.  params['w1']: (L, D, H), etc."""
    B, D = x.shape
    L, _, H = params["w1"].shape
    return pl.pallas_call(
        functools.partial(_resblock_stack_kernel, eps=eps),
        grid=(L,),
        out_shape=jax.ShapeDtypeStruct((B, D), jnp.float32),
        in_specs=[
            pl.BlockSpec((B, D), lambda l: (0, 0)),           # x (resident; read at l==0)
            pl.BlockSpec((None, D, H), lambda l: (l, 0, 0)),  # w1[l]
            pl.BlockSpec((None, 2, H), lambda l: (l, 0, 0)),  # [gamma1; beta1][l]
            pl.BlockSpec((None, H, D), lambda l: (l, 0, 0)),  # w2[l]
            pl.BlockSpec((None, 2, D), lambda l: (l, 0, 0)),  # [gamma2; beta2][l]
        ],
        out_specs=pl.BlockSpec((B, D), lambda l: (0, 0)),
        scratch_shapes=[pltpu.VMEM((B, D), jnp.float32)],     # activation carry
        compiler_params=pltpu.CompilerParams(
            dimension_semantics=("arbitrary",)),              # layer l+1 depends on l
    )(x, params["w1"], params["bn1"], params["w2"], params["bn2"])


# ----------------------------------------------------------------------------
# Parameter construction (PyTorch-style init).  Kernel params drop the Linear
# biases (mathematically cancelled by BN); reference params keep them.
# ----------------------------------------------------------------------------
def init_resblock_stack_params(key, num_blocks, input_dim, hidden_dim):
    keys = jax.random.split(key, 4 * num_blocks)
    lim1 = 1.0 / math.sqrt(input_dim)
    lim2 = 1.0 / math.sqrt(hidden_dim)
    w1s, b1s, w2s, b2s = [], [], [], []
    for i in range(num_blocks):
        k1w, k1b, k2w, k2b = keys[4 * i:4 * i + 4]
        w1s.append(jax.random.uniform(k1w, (input_dim, hidden_dim), jnp.float32, -lim1, lim1))
        b1s.append(jax.random.uniform(k1b, (hidden_dim,), jnp.float32, -lim1, lim1))
        w2s.append(jax.random.uniform(k2w, (hidden_dim, input_dim), jnp.float32, -lim2, lim2))
        b2s.append(jax.random.uniform(k2b, (input_dim,), jnp.float32, -lim2, lim2))
    w1 = jnp.stack(w1s)                                       # (L, D, H)
    w2 = jnp.stack(w2s)                                       # (L, H, D)
    gamma1 = jnp.ones((num_blocks, hidden_dim), jnp.float32)  # PyTorch BN defaults
    beta1 = jnp.zeros((num_blocks, hidden_dim), jnp.float32)
    gamma2 = jnp.ones((num_blocks, input_dim), jnp.float32)
    beta2 = jnp.zeros((num_blocks, input_dim), jnp.float32)
    kernel_params = {
        "w1": w1,
        "bn1": jnp.stack([gamma1, beta1], axis=1),            # (L, 2, H)
        "w2": w2,
        "bn2": jnp.stack([gamma2, beta2], axis=1),            # (L, 2, D)
    }
    ref_params = {
        "w1": w1, "b1": jnp.stack(b1s), "gamma1": gamma1, "beta1": beta1,
        "w2": w2, "b2": jnp.stack(b2s), "gamma2": gamma2, "beta2": beta2,
    }
    return kernel_params, ref_params


# ----------------------------------------------------------------------------
# Pure-JAX reference (full PyTorch forward semantics, biases included)
# ----------------------------------------------------------------------------
def _resblock_reference(x, w1, b1, g1, be1, w2, b2, g2, be2, eps=1e-5):
    h = x @ w1 + b1
    mu = jnp.mean(h, axis=0, keepdims=True)
    var = jnp.mean((h - mu) ** 2, axis=0, keepdims=True)
    h = (h - mu) * jax.lax.rsqrt(var + eps) * g1 + be1
    h = jnp.maximum(h, 0.0)
    y = h @ w2 + b2
    mu2 = jnp.mean(y, axis=0, keepdims=True)
    var2 = jnp.mean((y - mu2) ** 2, axis=0, keepdims=True)
    y = (y - mu2) * jax.lax.rsqrt(var2 + eps) * g2 + be2
    return jnp.maximum(y + x, 0.0)


def resblock_stack_reference(x, p, eps=1e-5):
    for i in range(p["w1"].shape[0]):
        x = _resblock_reference(x, p["w1"][i], p["b1"][i], p["gamma1"][i], p["beta1"][i],
                                p["w2"][i], p["b2"][i], p["gamma2"][i], p["beta2"][i], eps)
    return x


# ----------------------------------------------------------------------------
if __name__ == "__main__":
    B, INPUT_DIM, HIDDEN_DIM, NUM_BLOCKS = 8, 128, 256, 4   # lane-dense, sublane-aligned

    key = jax.random.PRNGKey(0)
    kp, kx = jax.random.split(key)
    kparams, rparams = init_resblock_stack_params(kp, NUM_BLOCKS, INPUT_DIM, HIDDEN_DIM)
    x = jax.random.normal(kx, (B, INPUT_DIM), jnp.float32)

    # Fused stack (L grid steps, one pallas_call).
    out = jax.block_until_ready(resblock_stack_forward(x, kparams))
    ref = resblock_stack_reference(x, rparams)

    assert out.shape == (B, INPUT_DIM)
    assert bool(jnp.all(jnp.isfinite(out)))
    assert bool(jnp.all(out >= 0.0))                                  # final relu
    assert bool(jnp.allclose(out, ref, atol=1e-4, rtol=1e-4))

    # Single ResBlock (the original module) runs through the same kernel with L == 1.
    kp1 = {k: v[:1] for k, v in kparams.items()}
    rp1 = {k: v[:1] for k, v in rparams.items()}
    out1 = jax.block_until_ready(resblock_stack_forward(x, kp1))
    ref1 = resblock_stack_reference(x, rp1)
    assert bool(jnp.allclose(out1, ref1, atol=1e-4, rtol=1e-4))

    print("KERNEL_OK")
</pallas_src>

<mosaic_0001>
module attributes {stable_mosaic.version = 11 : i64} {
  func.func @_resblock_stack_kernel(%arg0: i32, %arg1: memref<8x128xf32, #tpu.memory_space<vmem>>, %arg2: memref<1x128x256xf32, #tpu.memory_space<vmem>>, %arg3: memref<1x2x256xf32, #tpu.memory_space<vmem>>, %arg4: memref<1x256x128xf32, #tpu.memory_space<vmem>>, %arg5: memref<1x2x128xf32, #tpu.memory_space<vmem>>, %arg6: memref<8x128xf32, #tpu.memory_space<vmem>>, %arg7: memref<8x128xf32, #tpu.memory_space<vmem>>) attributes {dimension_semantics = [#tpu.dimension_semantics<arbitrary>], iteration_bounds = array<i64: 4>, scalar_prefetch = 0 : i64, scratch_operands = 1 : i64, tpu.core_type = #tpu.core_type<tc>, window_params = [{pipeline_mode = #tpu.pipeline_mode<synchronous>, transform_indices = @transform_0, window_bounds = array<i64: 8, 128>}, {transform_indices = @transform_1, window_bounds = array<i64: 1, 128, 256>}, {transform_indices = @transform_2, window_bounds = array<i64: 1, 2, 256>}, {transform_indices = @transform_3, window_bounds = array<i64: 1, 256, 128>}, {transform_indices = @transform_4, window_bounds = array<i64: 1, 2, 128>}, {pipeline_mode = #tpu.pipeline_mode<synchronous>, transform_indices = @transform_5, window_bounds = array<i64: 8, 128>}]} {
    %c0_i32 = arith.constant 0 : i32
    %0 = arith.cmpi eq, %arg0, %c0_i32 : i32
    %1 = arith.extui %0 : i1 to i32
    %c0_i32_0 = arith.constant 0 : i32
    %2 = arith.cmpi ne, %1, %c0_i32_0 : i32
    scf.if %2 {
      %c0_35 = arith.constant 0 : index
      %c0_36 = arith.constant 0 : index
      %65 = vector.load %arg1[%c0_35, %c0_36] : memref<8x128xf32, #tpu.memory_space<vmem>>, vector<8x128xf32>
      %c0_37 = arith.constant 0 : index
      %c0_38 = arith.constant 0 : index
      %66 = vector.load %arg7[%c0_37, %c0_38] : memref<8x128xf32, #tpu.memory_space<vmem>>, vector<8x128xf32>
      tpu.vector_store %arg7[%c0_37, %c0_38], %65 {strides = array<i32>} : memref<8x128xf32, #tpu.memory_space<vmem>>, vector<8x128xf32>,
    } else {
    }
    %c0 = arith.constant 0 : index
    %c0_1 = arith.constant 0 : index
    %3 = vector.load %arg7[%c0, %c0_1] : memref<8x128xf32, #tpu.memory_space<vmem>>, vector<8x128xf32>
    %c0_2 = arith.constant 0 : index
    %c0_3 = arith.constant 0 : index
    %c0_4 = arith.constant 0 : index
    %4 = vector.load %arg2[%c0_2, %c0_3, %c0_4] : memref<1x128x256xf32, #tpu.memory_space<vmem>>, vector<1x128x256xf32>
    %5 = vector.shape_cast %4 : vector<1x128x256xf32> to vector<128x256xf32>
    %cst = arith.constant dense<0.000000e+00> : vector<8x256xf32>
    %6 = tpu.matmul %3, %5, %cst {dimension_numbers = #tpu.dot_dimension_numbers<[1], [0], [0], [1], [0, 0, 1, 1], [], []>} : vector<8x128xf32>, vector<128x256xf32>, vector<8x256xf32> -> vector<8x256xf32>
    %cst_5 = arith.constant dense<0.000000e+00> : vector<256xf32>
    %7 = vector.multi_reduction <add>, %6, %cst_5 [0] : vector<8x256xf32> to vector<256xf32>
    %8 = vector.shape_cast %7 : vector<256xf32> to vector<1x256xf32>
    %cst_6 = arith.constant 8.000000e+00 : f32
    %9 = vector.broadcast %cst_6 : f32 to vector<1x256xf32>
    %10 = arith.divf %8, %9 : vector<1x256xf32>
    %11 = vector.broadcast %10 : vector<1x256xf32> to vector<8x256xf32>
    %12 = arith.subf %6, %11 : vector<8x256xf32>
    %13 = arith.mulf %12, %12 : vector<8x256xf32>
    %cst_7 = arith.constant dense<0.000000e+00> : vector<256xf32>
    %14 = vector.multi_reduction <add>, %13, %cst_7 [0] : vector<8x256xf32> to vector<256xf32>
    %15 = vector.shape_cast %14 : vector<256xf32> to vector<1x256xf32>
    %cst_8 = arith.constant 8.000000e+00 : f32
    %16 = vector.broadcast %cst_8 : f32 to vector<1x256xf32>
    %17 = arith.divf %15, %16 : vector<1x256xf32>
    %c0_9 = arith.constant 0 : index
    %c0_10 = arith.constant 0 : index
    %c0_11 = arith.constant 0 : index
    %18 = vector.load %arg3[%c0_9, %c0_10, %c0_11] : memref<1x2x256xf32, #tpu.memory_space<vmem>>, vector<1x1x256xf32>
    %19 = vector.shape_cast %18 : vector<1x1x256xf32> to vector<1x256xf32>
    %cst_12 = arith.constant 9.99999974E-6 : f32
    %20 = vector.broadcast %cst_12 : f32 to vector<1x256xf32>
    %21 = arith.addf %17, %20 : vector<1x256xf32>
    %22 = math.rsqrt %21 : vector<1x256xf32>
    %23 = arith.mulf %19, %22 : vector<1x256xf32>
    %24 = vector.broadcast %23 : vector<1x256xf32> to vector<8x256xf32>
    %25 = arith.mulf %12, %24 : vector<8x256xf32>
    %c0_13 = arith.constant 0 : index
    %c1 = arith.constant 1 : index
    %c0_14 = arith.constant 0 : index
    %26 = vector.load %arg3[%c0_13, %c1, %c0_14] : memref<1x2x256xf32, #tpu.memory_space<vmem>>, vector<1x1x256xf32>
    %27 = vector.shape_cast %26 : vector<1x1x256xf32> to vector<1x256xf32>
    %28 = vector.broadcast %27 : vector<1x256xf32> to vector<8x256xf32>
    %29 = arith.addf %25, %28 : vector<8x256xf32>
    %cst_15 = arith.constant 0.000000e+00 : f32
    %30 = vector.broadcast %cst_15 : f32 to vector<8x256xf32>
    %31 = arith.maximumf %29, %30 : vector<8x256xf32>
    %c0_16 = arith.constant 0 : index
    %c0_17 = arith.constant 0 : index
    %c0_18 = arith.constant 0 : index
    %32 = vector.load %arg4[%c0_16, %c0_17, %c0_18] : memref<1x256x128xf32, #tpu.memory_space<vmem>>, vector<1x256x128xf32>
    %33 = vector.shape_cast %32 : vector<1x256x128xf32> to vector<256x128xf32>
    %cst_19 = arith.constant dense<0.000000e+00> : vector<8x128xf32>
    %34 = tpu.matmul %31, %33, %cst_19 {dimension_numbers = #tpu.dot_dimension_numbers<[1], [0], [0], [1], [0, 0, 1, 1], [], []>} : vector<8x256xf32>, vector<256x128xf32>, vector<8x128xf32> -> vector<8x128xf32>
    %cst_20 = arith.constant dense<0.000000e+00> : vector<128xf32>
    %35 = vector.multi_reduction <add>, %34, %cst_20 [0] : vector<8x128xf32> to vector<128xf32>
    %36 = vector.shape_cast %35 : vector<128xf32> to vector<1x128xf32>
    %cst_21 = arith.constant 8.000000e+00 : f32
    %37 = vector.broadcast %cst_21 : f32 to vector<1x128xf32>
    %38 = arith.divf %36, %37 : vector<1x128xf32>
    %39 = vector.broadcast %38 : vector<1x128xf32> to vector<8x128xf32>
    %40 = arith.subf %34, %39 : vector<8x128xf32>
    %41 = arith.mulf %40, %40 : vector<8x128xf32>
    %cst_22 = arith.constant dense<0.000000e+00> : vector<128xf32>
    %42 = vector.multi_reduction <add>, %41, %cst_22 [0] : vector<8x128xf32> to vector<128xf32>
    %43 = vector.shape_cast %42 : vector<128xf32> to vector<1x128xf32>
    %cst_23 = arith.constant 8.000000e+00 : f32
    %44 = vector.broadcast %cst_23 : f32 to vector<1x128xf32>
    %45 = arith.divf %43, %44 : vector<1x128xf32>
    %c0_24 = arith.constant 0 : index
    %c0_25 = arith.constant 0 : index
    %c0_26 = arith.constant 0 : index
    %46 = vector.load %arg5[%c0_24, %c0_25, %c0_26] : memref<1x2x128xf32, #tpu.memory_space<vmem>>, vector<1x1x128xf32>
    %47 = vector.shape_cast %46 : vector<1x1x128xf32> to vector<1x128xf32>
    %cst_27 = arith.constant 9.99999974E-6 : f32
    %48 = vector.broadcast %cst_27 : f32 to vector<1x128xf32>
    %49 = arith.addf %45, %48 : vector<1x128xf32>
    %50 = math.rsqrt %49 : vector<1x128xf32>
    %51 = arith.mulf %47, %50 : vector<1x128xf32>
    %52 = vector.broadcast %51 : vector<1x128xf32> to vector<8x128xf32>
    %53 = arith.mulf %40, %52 : vector<8x128xf32>
    %c0_28 = arith.constant 0 : index
    %c1_29 = arith.constant 1 : index
    %c0_30 = arith.constant 0 : index
    %54 = vector.load %arg5[%c0_28, %c1_29, %c0_30] : memref<1x2x128xf32, #tpu.memory_space<vmem>>, vector<1x1x128xf32>
    %55 = vector.shape_cast %54 : vector<1x1x128xf32> to vector<1x128xf32>
    %56 = vector.broadcast %55 : vector<1x128xf32> to vector<8x128xf32>
    %57 = arith.addf %53, %56 : vector<8x128xf32>
    %58 = arith.addf %57, %3 : vector<8x128xf32>
    %cst_31 = arith.constant 0.000000e+00 : f32
    %59 = vector.broadcast %cst_31 : f32 to vector<8x128xf32>
    %60 = arith.maximumf %58, %59 : vector<8x128xf32>
    %c0_32 = arith.constant 0 : index
    %c0_33 = arith.constant 0 : index
    %61 = vector.load %arg7[%c0_32, %c0_33] : memref<8x128xf32, #tpu.memory_space<vmem>>, vector<8x128xf32>
    tpu.vector_store %arg7[%c0_32, %c0_33], %60 {strides = array<i32>} : memref<8x128xf32, #tpu.memory_space<vmem>>, vector<8x128xf32>,
    %c3_i32 = arith.constant 3 : i32
    %62 = arith.cmpi eq, %arg0, %c3_i32 : i32
    %63 = arith.extui %62 : i1 to i32
    %c0_i32_34 = arith.constant 0 : i32
    %64 = arith.cmpi ne, %63, %c0_i32_34 : i32
    scf.if %64 {
      %c0_35 = arith.constant 0 : index
      %c0_36 = arith.constant 0 : index
      %65 = vector.load %arg6[%c0_35, %c0_36] : memref<8x128xf32, #tpu.memory_space<vmem>>, vector<8x128xf32>
      tpu.vector_store %arg6[%c0_35, %c0_36], %60 {strides = array<i32>} : memref<8x128xf32, #tpu.memory_space<vmem>>, vector<8x128xf32>,
    } else {
    }
    return
  }
  func.func @transform_0(%arg0: i32) -> (i32, i32) {
    %c0_i32 = arith.constant 0 : i32
    %c0_i32_0 = arith.constant 0 : i32
    %c0_i32_1 = arith.constant 0 : i32
    return %c0_i32, %c0_i32_0 : i32, i32
  }
  func.func @transform_1(%arg0: i32) -> (i32, i32, i32) {
    %c0_i32 = arith.constant 0 : i32
    %c0_i32_0 = arith.constant 0 : i32
    %c0_i32_1 = arith.constant 0 : i32
    return %arg0, %c0_i32, %c0_i32_0 : i32, i32, i32
  }
  func.func @transform_2(%arg0: i32) -> (i32, i32, i32) {
    %c0_i32 = arith.constant 0 : i32
    %c0_i32_0 = arith.constant 0 : i32
    %c0_i32_1 = arith.constant 0 : i32
    return %arg0, %c0_i32, %c0_i32_0 : i32, i32, i32
  }
  func.func @transform_3(%arg0: i32) -> (i32, i32, i32) {
    %c0_i32 = arith.constant 0 : i32
    %c0_i32_0 = arith.constant 0 : i32
    %c0_i32_1 = arith.constant 0 : i32
    return %arg0, %c0_i32, %c0_i32_0 : i32, i32, i32
  }
  func.func @transform_4(%arg0: i32) -> (i32, i32, i32) {
    %c0_i32 = arith.constant 0 : i32
    %c0_i32_0 = arith.constant 0 : i32
    %c0_i32_1 = arith.constant 0 : i32
    return %arg0, %c0_i32, %c0_i32_0 : i32, i32, i32
  }
  func.func @transform_5(%arg0: i32) -> (i32, i32) {
    %c0_i32 = arith.constant 0 : i32
    %c0_i32_0 = arith.constant 0 : i32
    %c0_i32_1 = arith.constant 0 : i32
    return %c0_i32, %c0_i32_0 : i32, i32
  }
}

</mosaic_0001>

<llo_original>
// kernel: tpu_custom_call.1
$region0: #{tpu_custom_call.1}
  #allocation0 [shape = 'u32[]', space=smem, size = 0x4, offset = 0x4, fixed_abs, tag = 'smem constant byte address 0x4 - core index']
  #allocation1 [shape = 'u32[144,128]{1,0:T(1,128)}', space=vmem, size = 0x12000, scoped, tag = 'internal scratch']
  #allocation2 [shape = 'f32[8,128]{1,0:T(8,128)}', space=vmem, size = 0x1000, scoped, tag = 'scratch operand']
  %s0 = inlined_call_operand.hbm [shape: f32[8,128], index: 0, kind: input, shape index: {}]
  %s1 = inlined_call_operand.hbm [shape: f32[4,128,256], index: 1, kind: input, shape index: {}]
  %s2 = inlined_call_operand.hbm [shape: f32[4,2,256], index: 2, kind: input, shape index: {}]
  %s3 = inlined_call_operand.hbm [shape: f32[4,256,128], index: 3, kind: input, shape index: {}]
  %s4 = inlined_call_operand.vmem [shape: f32[4,2,128], index: 4, kind: input, shape index: {}]
  %s5 = inlined_call_operand.hbm [shape: f32[8,128], index: 5, kind: output, shape index: {}]
  %s6 = sld [smem:[#allocation0]]
  $region77: #{tpu_custom_call.1} parent=0
    _
  %s8 = ssub.s32 1, %s6
  %s9 = scalar_select 0, %s8, %s6
  $region1: #{tpu_custom_call.1} parent=0
    #allocation3 [shape = 'u8[4096]{0}', space=vmem, size = 0x1000, scoped, tag = 'input window, operand 0, single buffered']
    #allocation4 [shape = 's32[2]{0}', space=sflag, size = 0x8, scoped, tag = 'scoped memory for tpu_custom_call.1']
    #allocation5 [shape = 's32[2]{0}', space=sflag, size = 0x8, scoped, tag = 'scoped memory for tpu_custom_call.1']
    #allocation6 [shape = 'u8[262144]{0}', space=vmem, size = 0x40000, scoped, tag = 'input window, operand 1']
    #allocation7 [shape = 's32[2]{0}', space=sflag, size = 0x8, scoped, tag = 'scoped memory for tpu_custom_call.1']
    #allocation8 [shape = 'u8[4096]{0}', space=vmem, size = 0x1000, scoped, tag = 'input window, operand 2']
    #allocation9 [shape = 'u8[262144]{0}', space=vmem, size = 0x40000, scoped, tag = 'input window, operand 3']
    #allocation10 [shape = 's32[2]{0}', space=sflag, size = 0x8, scoped, tag = 'scoped memory for tpu_custom_call.1']
    #allocation11 [shape = 'u8[4096]{0}', space=vmem, size = 0x1000, scoped, tag = 'output window, operand 0, single buffered']
    %10 = vsyncpa [#allocation4], 0
    %11 = vsyncpa [#allocation7], 0
    %s12 = scalar_lea.sflag [#allocation7], 1
    %13 = vsyncpa %s12, 0
    %14 = vsyncpa [#allocation10], 0
    %s15 = scalar_lea.sflag [#allocation10], 1
    %16 = vsyncpa %s15, 0
    %17 = vsyncpa [#allocation5], 0
    loop: start=0, step=1, limit=6
    $region2: #{tpu_custom_call.1} parent=1 // loop_pre_header
      _
    $region3: #{tpu_custom_call.1} parent=1 // loop_header
      %s19 = sphi 0, %s23
      %p20 = scmp.ge.s32.totalorder %s19, 6
      %s27 = sphi 0, %s27
      %s29 = sphi 0, %s27
      %s30 = sphi 0, %s29
      %s44 = sphi 0, %s30
      %s50 = sphi 0, %s52
      %s53 = sphi 0, %s50
      %s54 = sphi 0, %s53
      %s70 = sphi 0, %s54
      %s76 = sphi 0, %s78
      %s79 = sphi 0, %s76
      %s80 = sphi 0, %s79
      %s96 = sphi 0, %s80
      %s102 = sphi 0, %s104
      %s105 = sphi 0, %s102
      %s106 = sphi 0, %s105
      %s122 = sphi 0, %s106
      %s128 = sphi 0, %s130
      %s131 = sphi 0, %s128
      %s132 = sphi 0, %s131
      %s148 = sphi 0, %s132
      %s152 = sphi 0, %s152
      %s154 = sphi 0, %s152
      %s155 = sphi 0, %s154
      %s169 = sphi 0, %s155
    $region4: #{tpu_custom_call.1} parent=1 // loop_header_branch
      %22 = sbr.rel (%p20) target = $region8
    $region5: #{tpu_custom_call.1} parent=1 // loop_body
      %s24 = ssub.s32 %s19, 1
      %s25 = ssub.s32 %s19, 2
      %s26 = sadd.s32 %s19, 1
      %s28 = sadd.s32 %s27, 1
      %p31 = scmp.eq.s32.totalorder %s19, 3
      %p32 = scmp.ne.s32.totalorder %s27, %s29
      %p33 = scmp.eq.s32.totalorder %s19, 0
      %p34 = por %p32, %p33
      %p35 = scmp.ne.s32.totalorder %s27, %s29
      %p36 = scmp.eq.s32.totalorder %s24, 3
      %p37 = por %p35, %p36
      %p38 = scmp.ne.s32.totalorder %s29, %s30
      %p39 = scmp.eq.s32.totalorder %s24, 0
      %p40 = por %p38, %p39
      %p41 = scmp.ne.s32.totalorder %s29, %s30
      %p42 = scmp.eq.s32.totalorder %s25, 3
      %p43 = por %p41, %p42
      %p45 = scmp.ne.s32.totalorder %s30, %s44
      %p46 = scmp.eq.s32.totalorder %s25, 0
      %p47 = por %p45, %p46
      %s48 = ssub.s32 %s19, %s26
      %p49 = scmp.eq.s32.totalorder %s48, 0
      %s51 = sadd.s32 %s50, 1
      %s52 = scalar_select %p49, %s50, %s51
      %p55 = pneg %p49
      %p56 = scmp.eq.s32.totalorder %s19, 3
      %p57 = por %p55, %p56
      %p58 = scmp.ne.s32.totalorder %s50, %s53
      %p59 = scmp.eq.s32.totalorder %s19, 0
      %p60 = por %p58, %p59
      %p61 = scmp.ne.s32.totalorder %s50, %s53
      %p62 = scmp.eq.s32.totalorder %s24, 3
      %p63 = por %p61, %p62
      %p64 = scmp.ne.s32.totalorder %s53, %s54
      %p65 = scmp.eq.s32.totalorder %s24, 0
      %p66 = por %p64, %p65
      %p67 = scmp.ne.s32.totalorder %s53, %s54
      %p68 = scmp.eq.s32.totalorder %s25, 3
      %p69 = por %p67, %p68
      %p71 = scmp.ne.s32.totalorder %s54, %s70
      %p72 = scmp.eq.s32.totalorder %s25, 0
      %p73 = por %p71, %p72
      %s74 = ssub.s32 %s19, %s26
      %p75 = scmp.eq.s32.totalorder %s74, 0
      %s77 = sadd.s32 %s76, 1
      %s78 = scalar_select %p75, %s76, %s77
      %p81 = pneg %p75
      %p82 = scmp.eq.s32.totalorder %s19, 3
      %p83 = por %p81, %p82
      %p84 = scmp.ne.s32.totalorder %s76, %s79
      %p85 = scmp.eq.s32.totalorder %s19, 0
      %p86 = por %p84, %p85
      %p87 = scmp.ne.s32.totalorder %s76, %s79
      %p88 = scmp.eq.s32.totalorder %s24, 3
      %p89 = por %p87, %p88
      %p90 = scmp.ne.s32.totalorder %s79, %s80
      %p91 = scmp.eq.s32.totalorder %s24, 0
      %p92 = por %p90, %p91
      %p93 = scmp.ne.s32.totalorder %s79, %s80
      %p94 = scmp.eq.s32.totalorder %s25, 3
      %p95 = por %p93, %p94
      %p97 = scmp.ne.s32.totalorder %s80, %s96
      %p98 = scmp.eq.s32.totalorder %s25, 0
      %p99 = por %p97, %p98
      %s100 = ssub.s32 %s19, %s26
      %p101 = scmp.eq.s32.totalorder %s100, 0
      %s103 = sadd.s32 %s102, 1
      %s104 = scalar_select %p101, %s102, %s103
      %p107 = pneg %p101
      %p108 = scmp.eq.s32.totalorder %s19, 3
      %p109 = por %p107, %p108
      %p110 = scmp.ne.s32.totalorder %s102, %s105
      %p111 = scmp.eq.s32.totalorder %s19, 0
      %p112 = por %p110, %p111
      %p113 = scmp.ne.s32.totalorder %s102, %s105
      %p114 = scmp.eq.s32.totalorder %s24, 3
      %p115 = por %p113, %p114
      %p116 = scmp.ne.s32.totalorder %s105, %s106
      %p117 = scmp.eq.s32.totalorder %s24, 0
      %p118 = por %p116, %p117
      %p119 = scmp.ne.s32.totalorder %s105, %s106
      %p120 = scmp.eq.s32.totalorder %s25, 3
      %p121 = por %p119, %p120
      %p123 = scmp.ne.s32.totalorder %s106, %s122
      %p124 = scmp.eq.s32.totalorder %s25, 0
      %p125 = por %p123, %p124
      %s126 = ssub.s32 %s19, %s26
      %p127 = scmp.eq.s32.totalorder %s126, 0
      %s129 = sadd.s32 %s128, 1
      %s130 = scalar_select %p127, %s128, %s129
      %p133 = pneg %p127
      %p134 = scmp.eq.s32.totalorder %s19, 3
      %p135 = por %p133, %p134
      %p136 = scmp.ne.s32.totalorder %s128, %s131
      %p137 = scmp.eq.s32.totalorder %s19, 0
      %p138 = por %p136, %p137
      %p139 = scmp.ne.s32.totalorder %s128, %s131
      %p140 = scmp.eq.s32.totalorder %s24, 3
      %p141 = por %p139, %p140
      %p142 = scmp.ne.s32.totalorder %s131, %s132
      %p143 = scmp.eq.s32.totalorder %s24, 0
      %p144 = por %p142, %p143
      %p145 = scmp.ne.s32.totalorder %s131, %s132
      %p146 = scmp.eq.s32.totalorder %s25, 3
      %p147 = por %p145, %p146
      %p149 = scmp.ne.s32.totalorder %s132, %s148
      %p150 = scmp.eq.s32.totalorder %s25, 0
      %p151 = por %p149, %p150
      %s153 = sadd.s32 %s152, 1
      %p156 = scmp.eq.s32.totalorder %s19, 3
      %p157 = scmp.ne.s32.totalorder %s152, %s154
      %p158 = scmp.eq.s32.totalorder %s19, 0
      %p159 = por %p157, %p158
      %p160 = scmp.ne.s32.totalorder %s152, %s154
      %p161 = scmp.eq.s32.totalorder %s24, 3
      %p162 = por %p160, %p161
      %p163 = scmp.ne.s32.totalorder %s154, %s155
      %p164 = scmp.eq.s32.totalorder %s24, 0
      %p165 = por %p163, %p164
      %p166 = scmp.ne.s32.totalorder %s154, %s155
      %p167 = scmp.eq.s32.totalorder %s25, 3
      %p168 = por %p166, %p167
      %p170 = scmp.ne.s32.totalorder %s155, %s169
      %p171 = scmp.eq.s32.totalorder %s25, 0
      %p172 = por %p170, %p171
      %p173 = scmp.le.s32.totalorder 1, %s19
      %p174 = scmp.lt.s32.totalorder %s19, 5
      %p175 = pnand %p173, %p174
      %p176 = pneg %p175
      // Predicated region
      $region9: #{tpu_custom_call.1} parent=5 // pred_check
        _
      $region10: #{tpu_custom_call.1} parent=5 // pred_check_branch
        %178 = sbr.rel (%p175) target = $region12
      $region11: #{tpu_custom_call.1} parent=5 // pred_region
        %s179 = ssub.s32 %s19, 1
        // Predicated region
        $region13: #{tpu_custom_call.1} parent=11 // pred_check
          %p180 = pneg %p40
        $region14: #{tpu_custom_call.1} parent=11 // pred_check_branch
          %182 = sbr.rel (%p180) target = $region16
        $region15: #{tpu_custom_call.1} parent=11 // pred_region
          %s184 = ssub.s32 128, 128
          %185 = vsyncadd [#allocation4], %s184
          %s187 = sshll.u32 [#allocation3], 4
          %s188 = int_to_ptr.vmem [resolvable:$true] %s187
          %190 = dma.hbm_to_vmem [thread:$0]  %s0, 128, %s188, [#allocation4]
        $region16: #{tpu_custom_call.1} parent=11 // pred_fallthru
          _
      $region12: #{tpu_custom_call.1} parent=5 // pred_fallthru
        _
      %p191 = scmp.lt.s32.totalorder %s19, 4
      // Predicated region
      $region17: #{tpu_custom_call.1} parent=5 // pred_check
        %p192 = pneg %p191
      $region18: #{tpu_custom_call.1} parent=5 // pred_check_branch
        %194 = sbr.rel (%p192) target = $region20
      $region19: #{tpu_custom_call.1} parent=5 // pred_region
        // Predicated region
        $region21: #{tpu_custom_call.1} parent=19 // pred_check
          %p195 = pneg %p60
        $region22: #{tpu_custom_call.1} parent=19 // pred_check_branch
          %197 = sbr.rel (%p195) target = $region24
        $region23: #{tpu_custom_call.1} parent=19 // pred_region
          %s198 = sand.u32 %s19, 1
          %s199 = scalar_lea.sflag [#allocation7], %s198
          %s200 = sand.u32 %s50, 1
          %s201 = smul.addr %s200, 256
          %s202 = scalar_lea.vmem [#allocation6], %s201
          %s204 = ssub.s32 4096, 4096
          %205 = vsyncadd %s199, %s204
          %s206 = smul.addr %s19, 32
          %s207 = smul.addr %s206, 128
          %s208 = scalar_lea.hbm %s1, %s207
          %s209 = sshll.u32 %s202, 4
          %s210 = int_to_ptr.vmem [resolvable:$true] %s209
          %215 = dma.hbm_to_vmem [thread:$0]  %s208, 4096, %s210, %s199, 256, 256, 16
        $region24: #{tpu_custom_call.1} parent=19 // pred_fallthru
          _
        // Predicated region
        $region25: #{tpu_custom_call.1} parent=19 // pred_check
          %p216 = pneg %p86
        $region26: #{tpu_custom_call.1} parent=19 // pred_check_branch
          %218 = sbr.rel (%p216) target = $region28
        $region27: #{tpu_custom_call.1} parent=19 // pred_region
          %s219 = sand.u32 %s19, 1
          %s220 = scalar_lea.sflag [#allocation7], %s219
          %s221 = sand.u32 %s76, 1
          %s222 = smul.addr %s221, 4
          %s223 = scalar_lea.vmem [#allocation8], %s222
          %s225 = ssub.s32 64, 64
          %226 = vsyncadd %s220, %s225
          %s227 = smul.addr %s19, 2
          %s228 = smul.addr %s227, 32
          %s229 = scalar_lea.hbm %s2, %s228
          %s231 = sshll.u32 %s223, 4
          %s232 = int_to_ptr.vmem [resolvable:$true] %s231
          %234 = dma.hbm_to_vmem [thread:$0]  %s229, 64, %s232, %s220
        $region28: #{tpu_custom_call.1} parent=19 // pred_fallthru
          _
        // Predicated region
        $region29: #{tpu_custom_call.1} parent=19 // pred_check
          %p235 = pneg %p112
        $region30: #{tpu_custom_call.1} parent=19 // pred_check_branch
          %237 = sbr.rel (%p235) target = $region32
        $region31: #{tpu_custom_call.1} parent=19 // pred_region
          %s238 = sand.u32 %s102, 1
          %s239 = scalar_lea.sflag [#allocation10], %s238
          %s240 = sand.u32 %s102, 1
          %s241 = smul.addr %s240, 256
          %s242 = scalar_lea.vmem [#allocation9], %s241
          %s244 = ssub.s32 4096, 4096
          %245 = vsyncadd %s239, %s244
          %s246 = smul.addr %s19, 32
          %s247 = smul.addr %s246, 128
          %s248 = scalar_lea.hbm %s3, %s247
          %s249 = sshll.u32 %s242, 4
          %s250 = int_to_ptr.vmem [resolvable:$true] %s249
          %255 = dma.hbm_to_vmem [thread:$0]  %s248, 4096, %s250, %s239, 128, 128, 8
        $region32: #{tpu_custom_call.1} parent=19 // pred_fallthru
          _
        // Predicated region
        $region33: #{tpu_custom_call.1} parent=19 // pred_check
          %p256 = pneg %p138
        $region34: #{tpu_custom_call.1} parent=19 // pred_check_branch
          %258 = sbr.rel (%p256) target = $region36
        $region35: #{tpu_custom_call.1} parent=19 // pred_region
          %p259 = scmp.lt.s32.totalorder %s19, 3
          %s260 = scalar_select %p259, %s19, 3
          %s261 = smul.addr %s260, 2
          %s262 = scalar_lea.vmem %s4, %s261
        $region36: #{tpu_custom_call.1} parent=19 // pred_fallthru
          _
      $region20: #{tpu_custom_call.1} parent=5 // pred_fallthru
        _
      %p263 = scmp.le.s32.totalorder 1, %s19
      %p264 = scmp.lt.s32.totalorder %s19, 5
      %p265 = pnand %p263, %p264
      %p266 = pneg %p265
      // Predicated region
      $region37: #{tpu_custom_call.1} parent=5 // pred_check
        _
      $region38: #{tpu_custom_call.1} parent=5 // pred_check_branch
        %268 = sbr.rel (%p265) target = $region40
      $region39: #{tpu_custom_call.1} parent=5 // pred_region
        %s269 = ssub.s32 %s19, 1
        // Predicated region
        $region41: #{tpu_custom_call.1} parent=39 // pred_check
          %p270 = pneg %p40
        $region42: #{tpu_custom_call.1} parent=39 // pred_check_branch
          %272 = sbr.rel (%p270) target = $region44
        $region43: #{tpu_custom_call.1} parent=39 // pred_region
          %273 = dma.done [#allocation4], 128
        $region44: #{tpu_custom_call.1} parent=39 // pred_fallthru
          _
        %s274 = sand.u32 %s24, 1
        %s275 = scalar_lea.sflag [#allocation7], %s274
        %s276 = sand.u32 %s53, 1
        %s277 = smul.addr %s276, 256
        %s278 = scalar_lea.vmem [#allocation6], %s277
        // Predicated region
        $region45: #{tpu_custom_call.1} parent=39 // pred_check
          %p279 = pneg %p66
        $region46: #{tpu_custom_call.1} parent=39 // pred_check_branch
          %281 = sbr.rel (%p279) target = $region48
        $region47: #{tpu_custom_call.1} parent=39 // pred_region
          %282 = dma.done %s275, 4096
        $region48: #{tpu_custom_call.1} parent=39 // pred_fallthru
          _
        %s283 = sand.u32 %s24, 1
        %s284 = scalar_lea.sflag [#allocation7], %s283
        %s285 = sand.u32 %s79, 1
        %s286 = smul.addr %s285, 4
        %s287 = scalar_lea.vmem [#allocation8], %s286
        // Predicated region
        $region49: #{tpu_custom_call.1} parent=39 // pred_check
          %p288 = pneg %p92
        $region50: #{tpu_custom_call.1} parent=39 // pred_check_branch
          %290 = sbr.rel (%p288) target = $region52
        $region51: #{tpu_custom_call.1} parent=39 // pred_region
          %291 = dma.done %s284, 64
        $region52: #{tpu_custom_call.1} parent=39 // pred_fallthru
          _
        %s292 = sand.u32 %s105, 1
        %s293 = scalar_lea.sflag [#allocation10], %s292
        %s294 = sand.u32 %s105, 1
        %s295 = smul.addr %s294, 256
        %s296 = scalar_lea.vmem [#allocation9], %s295
        // Predicated region
        $region53: #{tpu_custom_call.1} parent=39 // pred_check
          %p297 = pneg %p118
        $region54: #{tpu_custom_call.1} parent=39 // pred_check_branch
          %299 = sbr.rel (%p297) target = $region56
        $region55: #{tpu_custom_call.1} parent=39 // pred_region
          %300 = dma.done %s293, 4096
        $region56: #{tpu_custom_call.1} parent=39 // pred_fallthru
          _
        %p301 = pneg %p40
        %p302 = pneg %p37
        %s303 = sand.u32 %s24, 1
        %s304 = scalar_lea.sflag [#allocation7], %s303
        %s305 = sand.u32 %s53, 1
        %s306 = smul.addr %s305, 256
        %s307 = scalar_lea.vmem [#allocation6], %s306
        %p308 = pneg %p66
        %p309 = pneg %p63
        %s310 = sand.u32 %s24, 1
        %s311 = scalar_lea.sflag [#allocation7], %s310
        %s312 = sand.u32 %s79, 1
        %s313 = smul.addr %s312, 4
        %s314 = scalar_lea.vmem [#allocation8], %s313
        %p315 = pneg %p92
        %p316 = pneg %p89
        %s317 = sand.u32 %s105, 1
        %s318 = scalar_lea.sflag [#allocation10], %s317
        %s319 = sand.u32 %s105, 1
        %s320 = smul.addr %s319, 256
        %s321 = scalar_lea.vmem [#allocation9], %s320
        %p322 = pneg %p118
        %p323 = pneg %p115
        %p324 = scmp.lt.s32.totalorder %s24, 3
        %s325 = scalar_select %p324, %s24, 3
        %s326 = smul.addr %s325, 2
        %s327 = scalar_lea.vmem %s4, %s326
        %p328 = pneg %p144
        %p329 = pneg %p141
        %p330 = pneg %p165
        %p331 = pneg %p162
        %p332 = scmp.lt.s32.totalorder %s24, 3
        %s333 = scalar_select %p332, %s24, 3
        %s334 = smul.addr %s333, 2
        %s335 = scalar_lea.vmem %s4, %s334
        %p336 = scmp.eq.s32.totalorder %s24, 0
        // Predicated region
        $region57: #{tpu_custom_call.1} parent=39 // pred_check
          %p337 = pneg %p336
        $region58: #{tpu_custom_call.1} parent=39 // pred_check_branch
          %339 = sbr.rel (%p337) target = $region60
        $region59: #{tpu_custom_call.1} parent=39 // pred_region
          %v340 = vld [vmem:[#allocation3] sm:$0xff]
          %341 = vst [vmem:[#allocation2] sm:$0xff] %v340
        $region60: #{tpu_custom_call.1} parent=39 // pred_fallthru
          _
        %v342 = vld [vmem:[#allocation2] sm:$0xff]
        %v343 = vld [vmem:[%s278] sm:$0xff]
        %v344 = vld [vmem:[%s278 + $0x8] sm:$0xff]
        %v345 = vld [vmem:[%s278 + $0x10] sm:$0xff]
        %v346 = vld [vmem:[%s278 + $0x18] sm:$0xff]
        %v347 = vld [vmem:[%s278 + $0x20] sm:$0xff]
        %v348 = vld [vmem:[%s278 + $0x28] sm:$0xff]
        %v349 = vld [vmem:[%s278 + $0x30] sm:$0xff]
        %v350 = vld [vmem:[%s278 + $0x38] sm:$0xff]
        %v351 = vld [vmem:[%s278 + $0x40] sm:$0xff]
        %v352 = vld [vmem:[%s278 + $0x48] sm:$0xff]
        %v353 = vld [vmem:[%s278 + $0x50] sm:$0xff]
        %v354 = vld [vmem:[%s278 + $0x58] sm:$0xff]
        %v355 = vld [vmem:[%s278 + $0x60] sm:$0xff]
        %v356 = vld [vmem:[%s278 + $0x68] sm:$0xff]
        %v357 = vld [vmem:[%s278 + $0x70] sm:$0xff]
        %v358 = vld [vmem:[%s278 + $0x78] sm:$0xff]
        %v359 = vld [vmem:[%s278 + $0x80] sm:$0xff]
        %v360 = vld [vmem:[%s278 + $0x88] sm:$0xff]
        %v361 = vld [vmem:[%s278 + $0x90] sm:$0xff]
        %v362 = vld [vmem:[%s278 + $0x98] sm:$0xff]
        %v363 = vld [vmem:[%s278 + $0xa0] sm:$0xff]
        %v364 = vld [vmem:[%s278 + $0xa8] sm:$0xff]
        %v365 = vld [vmem:[%s278 + $0xb0] sm:$0xff]
        %v366 = vld [vmem:[%s278 + $0xb8] sm:$0xff]
        %v367 = vld [vmem:[%s278 + $0xc0] sm:$0xff]
        %v368 = vld [vmem:[%s278 + $0xc8] sm:$0xff]
        %v369 = vld [vmem:[%s278 + $0xd0] sm:$0xff]
        %v370 = vld [vmem:[%s278 + $0xd8] sm:$0xff]
        %v371 = vld [vmem:[%s278 + $0xe0] sm:$0xff]
        %v372 = vld [vmem:[%s278 + $0xe8] sm:$0xff]
        %v373 = vld [vmem:[%s278 + $0xf0] sm:$0xff]
        %v374 = vld [vmem:[%s278 + $0xf8] sm:$0xff]
        %375 = vmatprep.subr.mxu0 %v344
        %376 = vmatpush1.msra.mxu0 %v343
        %377 = vmatprep.subr.mxu0 %v346
        %378 = vmatpush1.msra.mxu0 %v345
        %379 = vmatprep.subr.mxu0 %v348
        %380 = vmatpush1.msra.mxu0 %v347
        %381 = vmatprep.subr.mxu0 %v350
        %382 = vmatpush1.msra.mxu0 %v349
        %383 = vmatprep.subr.mxu0 %v352
        %384 = vmatpush1.msra.mxu0 %v351
        %385 = vmatprep.subr.mxu0 %v354
        %386 = vmatpush1.msra.mxu0 %v353
        %387 = vmatprep.subr.mxu0 %v356
        %388 = vmatpush1.msra.mxu0 %v355
        %389 = vmatprep.subr.mxu0 %v358
        %390 = vmatpush1.msra.mxu0 %v357
        %391 = vmatprep.subr.mxu0 %v360
        %392 = vmatpush1.msra.mxu0 %v359
        %393 = vmatprep.subr.mxu0 %v362
        %394 = vmatpush1.msra.mxu0 %v361
        %395 = vmatprep.subr.mxu0 %v364
        %396 = vmatpush1.msra.mxu0 %v363
        %397 = vmatprep.subr.mxu0 %v366
        %398 = vmatpush1.msra.mxu0 %v365
        %399 = vmatprep.subr.mxu0 %v368
        %400 = vmatpush1.msra.mxu0 %v367
        %401 = vmatprep.subr.mxu0 %v370
        %402 = vmatpush1.msra.mxu0 %v369
        %403 = vmatprep.subr.mxu0 %v372
        %404 = vmatpush1.msra.mxu0 %v371
        %405 = vmatprep.subr.mxu0 %v374
        %406 = vmatpush1.msra.mxu0 %v373
        %407 = vmatprep.subr.mxu0 0.0
        %408 = vmatpush1.msra.mxu0 0.0
        %409 = vmatprep.subr.mxu0 0.0
        %410 = vmatpush1.msra.mxu0 0.0
        %411 = vmatprep.subr.mxu0 0.0
        %412 = vmatpush1.msra.mxu0 0.0
        %413 = vmatprep.subr.mxu0 0.0
        %414 = vmatpush1.msra.mxu0 0.0
        %415 = vmatprep.subr.mxu0 0.0
        %416 = vmatpush1.msra.mxu0 0.0
        %417 = vmatprep.subr.mxu0 0.0
        %418 = vmatpush1.msra.mxu0 0.0
        %419 = vmatprep.subr.mxu0 0.0
        %420 = vmatpush1.msra.mxu0 0.0
        %421 = vmatprep.subr.mxu0 0.0
        %422 = vmatpush1.msra.mxu0 0.0
        %423 = vmatprep.subr.mxu0 0.0
        %424 = vmatpush1.msra.mxu0 0.0
        %425 = vmatprep.subr.mxu0 0.0
        %426 = vmatpush1.msra.mxu0 0.0
        %427 = vmatprep.subr.mxu0 0.0
        %428 = vmatpush1.msra.mxu0 0.0
        %429 = vmatprep.subr.mxu0 0.0
        %430 = vmatpush1.msra.mxu0 0.0
        %431 = vmatprep.subr.mxu0 0.0
        %432 = vmatpush1.msra.mxu0 0.0
        %433 = vmatprep.subr.mxu0 0.0
        %434 = vmatpush1.msra.mxu0 0.0
        %435 = vmatprep.subr.mxu0 0.0
        %436 = vmatpush1.msra.mxu0 0.0
        %437 = vmatprep.subr.mxu0 0.0
        %438 = vmatpush1.msra.mxu0 0.0
        %439 = vmatprep.mubr.f32.mxu0 0.0
        %440 = vmatmul.mubr.f32.gmra.mrb[0].mxu0 %v342
        %v441 = vpop.f32.mrb[0].mxu0
        %v442 = vadd.f32 0.0, %v441
        %v443 = vpop.f32.mrb[0].mxu0
        %v444 = vadd.f32 0.0, %v443
        %445 = vdwg.mxu0
        %v446 = vrot.slane %v442, 4
        %v447 = vadd.f32 %v442, %v446
        %v448 = vrot.slane %v447, 2
        %v449 = vadd.f32 %v447, %v448
        %v450 = vrot.slane %v449, 1
        %v451 = vadd.f32 %v449, %v450
        %v452 = vrot.slane %v444, 4
        %v453 = vadd.f32 %v444, %v452
        %v454 = vrot.slane %v453, 2
        %v455 = vadd.f32 %v453, %v454
        %v456 = vrot.slane %v455, 1
        %v457 = vadd.f32 %v455, %v456
        %v458 = vrcp.pop 8.0
        %v459 = vmul.f32 %v451, %v458
        %v460 = vmul.f32 %v457, %v458
        %v461 = vsub.f32 %v442, %v459
        %v462 = vsub.f32 %v444, %v460
        %v463 = vmul.f32 %v461, %v461
        %v464 = vmul.f32 %v462, %v462
        %v465 = vrot.slane %v463, 4
        %v466 = vadd.f32 %v463, %v465
        %v467 = vrot.slane %v466, 2
        %v468 = vadd.f32 %v466, %v467
        %v469 = vrot.slane %v468, 1
        %v470 = vadd.f32 %v468, %v469
        %v471 = vrot.slane %v464, 4
        %v472 = vadd.f32 %v464, %v471
        %v473 = vrot.slane %v472, 2
        %v474 = vadd.f32 %v472, %v473
        %v475 = vrot.slane %v474, 1
        %v476 = vadd.f32 %v474, %v475
        %v477 = vmul.f32 %v470, %v458
        %v478 = vmul.f32 %v476, %v458
        %v479 = vld [vmem:[%s287] ss:$2 sm:$0x3]
        %v480 = vadd.f32 %v477, 1e-05
        %v481 = vadd.f32 %v478, 1e-05
        %v482 = vrsqrt.pop %v480
        %v483 = vrsqrt.pop %v481
        %v486 = vcombine.low %v482, %v483
        %v488 = vunpack.c.l.s4 1966171168
        %v489 = vunpack.c.0.s8 %v488
        %v490 = vlaneseq
        %v491 = vshrl.u32 %v490, 7
        %v492 = vsub.s32 %v489, %v491
        %v493 = vrot.slane %v486, %v492
        %v495 = vunpack.c.l.s4 1966171168
        %v496 = vunpack.c.0.s8 %v495
        %v497 = vlaneseq
        %v498 = vshrl.u32 %v497, 7
        %v499 = vsub.s32 %v496, %v498
        %v500 = vrot.slane %v493, %v499
        %v502 = vmul.f32 %v479, %v500
        %v504 = vlaneseq
        %v505 = vshrl.u32 %v504, 7
        %v506 = vsub.s32 0, %v505
        %v507 = vrot.slane %v502, %v506
        %v508 = vlaneseq
        %v509 = vshrl.u32 %v508, 7
        %v510 = vsub.s32 1, %v509
        %v511 = vrot.slane %v502, %v510
        %v514 = vmul.f32 %v461, %v507
        %v515 = vmul.f32 %v462, %v511
        %s516 = scalar_lea.vmem %s287, 1 [#allocation8]
        %v517 = vld [vmem:[%s516] ss:$2 sm:$0x3]
        %v519 = vlaneseq
        %v520 = vshrl.u32 %v519, 7
        %v521 = vsub.s32 0, %v520
        %v522 = vrot.slane %v517, %v521
        %v523 = vlaneseq
        %v524 = vshrl.u32 %v523, 7
        %v525 = vsub.s32 1, %v524
        %v526 = vrot.slane %v517, %v525
        %v529 = vadd.f32 %v514, %v522
        %v530 = vadd.f32 %v515, %v526
        %v531 = vmax.f32 %v529, 0.0
        %v532 = vmax.f32 %v530, 0.0
        %v533 = vld [vmem:[%s296] sm:$0xff]
        %v534 = vld [vmem:[%s296 + $0x8] sm:$0xff]
        %v535 = vld [vmem:[%s296 + $0x10] sm:$0xff]
        %v536 = vld [vmem:[%s296 + $0x18] sm:$0xff]
        %v537 = vld [vmem:[%s296 + $0x20] sm:$0xff]
        %v538 = vld [vmem:[%s296 + $0x28] sm:$0xff]
        %v539 = vld [vmem:[%s296 + $0x30] sm:$0xff]
        %v540 = vld [vmem:[%s296 + $0x38] sm:$0xff]
        %v541 = vld [vmem:[%s296 + $0x40] sm:$0xff]
        %v542 = vld [vmem:[%s296 + $0x48] sm:$0xff]
        %v543 = vld [vmem:[%s296 + $0x50] sm:$0xff]
        %v544 = vld [vmem:[%s296 + $0x58] sm:$0xff]
        %v545 = vld [vmem:[%s296 + $0x60] sm:$0xff]
        %v546 = vld [vmem:[%s296 + $0x68] sm:$0xff]
        %v547 = vld [vmem:[%s296 + $0x70] sm:$0xff]
        %v548 = vld [vmem:[%s296 + $0x78] sm:$0xff]
        %v549 = vld [vmem:[%s296 + $0x80] sm:$0xff]
        %v550 = vld [vmem:[%s296 + $0x88] sm:$0xff]
        %v551 = vld [vmem:[%s296 + $0x90] sm:$0xff]
        %v552 = vld [vmem:[%s296 + $0x98] sm:$0xff]
        %v553 = vld [vmem:[%s296 + $0xa0] sm:$0xff]
        %v554 = vld [vmem:[%s296 + $0xa8] sm:$0xff]
        %v555 = vld [vmem:[%s296 + $0xb0] sm:$0xff]
        %v556 = vld [vmem:[%s296 + $0xb8] sm:$0xff]
        %v557 = vld [vmem:[%s296 + $0xc0] sm:$0xff]
        %v558 = vld [vmem:[%s296 + $0xc8] sm:$0xff]
        %v559 = vld [vmem:[%s296 + $0xd0] sm:$0xff]
        %v560 = vld [vmem:[%s296 + $0xd8] sm:$0xff]
        %v561 = vld [vmem:[%s296 + $0xe0] sm:$0xff]
        %v562 = vld [vmem:[%s296 + $0xe8] sm:$0xff]
        %v563 = vld [vmem:[%s296 + $0xf0] sm:$0xff]
        %v564 = vld [vmem:[%s296 + $0xf8] sm:$0xff]
        %565 = vmatprep.subr.mxu0 0.0
        %566 = vmatpush1.msra.mxu0 %v533
        %567 = vmatprep.subr.mxu0 0.0
        %568 = vmatpush1.msra.mxu0 %v534
        %569 = vmatprep.subr.mxu0 0.0
        %570 = vmatpush1.msra.mxu0 %v535
        %571 = vmatprep.subr.mxu0 0.0
        %572 = vmatpush1.msra.mxu0 %v536
        %573 = vmatprep.subr.mxu0 0.0
        %574 = vmatpush1.msra.mxu0 %v537
        %575 = vmatprep.subr.mxu0 0.0
        %576 = vmatpush1.msra.mxu0 %v538
        %577 = vmatprep.subr.mxu0 0.0
        %578 = vmatpush1.msra.mxu0 %v539
        %579 = vmatprep.subr.mxu0 0.0
        %580 = vmatpush1.msra.mxu0 %v540
        %581 = vmatprep.subr.mxu0 0.0
        %582 = vmatpush1.msra.mxu0 %v541
        %583 = vmatprep.subr.mxu0 0.0
        %584 = vmatpush1.msra.mxu0 %v542
        %585 = vmatprep.subr.mxu0 0.0
        %586 = vmatpush1.msra.mxu0 %v543
        %587 = vmatprep.subr.mxu0 0.0
        %588 = vmatpush1.msra.mxu0 %v544
        %589 = vmatprep.subr.mxu0 0.0
        %590 = vmatpush1.msra.mxu0 %v545
        %591 = vmatprep.subr.mxu0 0.0
        %592 = vmatpush1.msra.mxu0 %v546
        %593 = vmatprep.subr.mxu0 0.0
        %594 = vmatpush1.msra.mxu0 %v547
        %595 = vmatprep.subr.mxu0 0.0
        %596 = vmatpush1.msra.mxu0 %v548
        %597 = vmatprep.subr.mxu0 0.0
        %598 = vmatpush1.msra.mxu0 %v549
        %599 = vmatprep.subr.mxu0 0.0
        %600 = vmatpush1.msra.mxu0 %v550
        %601 = vmatprep.subr.mxu0 0.0
        %602 = vmatpush1.msra.mxu0 %v551
        %603 = vmatprep.subr.mxu0 0.0
        %604 = vmatpush1.msra.mxu0 %v552
        %605 = vmatprep.subr.mxu0 0.0
        %606 = vmatpush1.msra.mxu0 %v553
        %607 = vmatprep.subr.mxu0 0.0
        %608 = vmatpush1.msra.mxu0 %v554
        %609 = vmatprep.subr.mxu0 0.0
        %610 = vmatpush1.msra.mxu0 %v555
        %611 = vmatprep.subr.mxu0 0.0
        %612 = vmatpush1.msra.mxu0 %v556
        %613 = vmatprep.subr.mxu0 0.0
        %614 = vmatpush1.msra.mxu0 %v557
        %615 = vmatprep.subr.mxu0 0.0
        %616 = vmatpush1.msra.mxu0 %v558
        %617 = vmatprep.subr.mxu0 0.0
        %618 = vmatpush1.msra.mxu0 %v559
        %619 = vmatprep.subr.mxu0 0.0
        %620 = vmatpush1.msra.mxu0 %v560
        %621 = vmatprep.subr.mxu0 0.0
        %622 = vmatpush1.msra.mxu0 %v561
        %623 = vmatprep.subr.mxu0 0.0
        %624 = vmatpush1.msra.mxu0 %v562
        %625 = vmatprep.subr.mxu0 0.0
        %626 = vmatpush1.msra.mxu0 %v563
        %627 = vmatprep.subr.mxu0 0.0
        %628 = vmatpush1.msra.mxu0 %v564
        %629 = vmatprep.mubr.f32.mxu0 %v532
        %630 = vmatmul.mubr.f32.gmra.mrb[0].mxu0 %v531
        %v631 = vpop.f32.mrb[0].mxu0
        %v632 = vadd.f32 0.0, %v631
        %v633 = vpop.f32.mrb[0].mxu0
        %634 = vdwg.mxu0
        %v635 = vrot.slane %v632, 4
        %v636 = vadd.f32 %v632, %v635
        %v637 = vrot.slane %v636, 2
        %v638 = vadd.f32 %v636, %v637
        %v639 = vrot.slane %v638, 1
        %v640 = vadd.f32 %v638, %v639
        %v641 = vmul.f32 %v640, %v458
        %v642 = vsub.f32 %v632, %v641
        %v643 = vmul.f32 %v642, %v642
        %v644 = vrot.slane %v643, 4
        %v645 = vadd.f32 %v643, %v644
        %v646 = vrot.slane %v645, 2
        %v647 = vadd.f32 %v645, %v646
        %v648 = vrot.slane %v647, 1
        %v649 = vadd.f32 %v647, %v648
        %v650 = vmul.f32 %v649, %v458
        %v651 = vld [vmem:[%s335] sm:$0x1]
        %v652 = vadd.f32 %v650, 1e-05
        %v653 = vrsqrt.pop %v652
        %v654 = vmul.f32 %v651, %v653
        %v655 = vlaneseq
        %v656 = vshrl.u32 %v655, 7
        %v657 = vsub.s32 0, %v656
        %v658 = vrot.slane %v654, %v657
        %v659 = vmul.f32 %v642, %v658
        %v660 = vld [vmem:[%s335 + $0x1] sm:$0x1]
        %v661 = vlaneseq
        %v662 = vshrl.u32 %v661, 7
        %v663 = vsub.s32 0, %v662
        %v664 = vrot.slane %v660, %v663
        %v665 = vadd.f32 %v659, %v664
        %v666 = vadd.f32 %v665, %v342
        %v667 = vmax.f32 %v666, 0.0
        %668 = vst [vmem:[#allocation2] sm:$0xff] %v667
        %p669 = scmp.eq.s32.totalorder %s24, 3
        // Predicated region
        $region61: #{tpu_custom_call.1} parent=39 // pred_check
          %p670 = pneg %p669
        $region62: #{tpu_custom_call.1} parent=39 // pred_check_branch
          %672 = sbr.rel (%p670) target = $region64
        $region63: #{tpu_custom_call.1} parent=39 // pred_region
          %673 = vst [vmem:[#allocation11] sm:$0xff] %v667
        $region64: #{tpu_custom_call.1} parent=39 // pred_fallthru
          _
        // Predicated region
        $region65: #{tpu_custom_call.1} parent=39 // pred_check
          %p674 = pneg %p162
        $region66: #{tpu_custom_call.1} parent=39 // pred_check_branch
          %676 = sbr.rel (%p674) target = $region68
        $region67: #{tpu_custom_call.1} parent=39 // pred_region
          %s678 = ssub.s32 128, 128
          %679 = vsyncadd [#allocation5], %s678
          %s681 = sshll.u32 [#allocation11], 4
          %s682 = int_to_ptr.vmem [resolvable:$true] %s681
          %684 = dma.vmem_to_hbm [thread:$0]  %s682, 128, %s5, [#allocation5]
        $region68: #{tpu_custom_call.1} parent=39 // pred_fallthru
          _
        // Predicated region
        $region69: #{tpu_custom_call.1} parent=39 // pred_check
          %p685 = pneg %p162
        $region70: #{tpu_custom_call.1} parent=39 // pred_check_branch
          %687 = sbr.rel (%p685) target = $region72
        $region71: #{tpu_custom_call.1} parent=39 // pred_region
          %688 = dma.done [#allocation5], 128
        $region72: #{tpu_custom_call.1} parent=39 // pred_fallthru
          _
      $region40: #{tpu_custom_call.1} parent=5 // pred_fallthru
        _
      %p689 = scmp.le.s32.totalorder 2, %s19
      // Predicated region
      $region73: #{tpu_custom_call.1} parent=5 // pred_check
        %p690 = pneg %p689
      $region74: #{tpu_custom_call.1} parent=5 // pred_check_branch
        %692 = sbr.rel (%p690) target = $region76
      $region75: #{tpu_custom_call.1} parent=5 // pred_region
        %s693 = ssub.s32 %s19, 2
      $region76: #{tpu_custom_call.1} parent=5 // pred_fallthru
        _
    $region6: #{tpu_custom_call.1} parent=1 // loop_footer
      %s23 = sadd.s32 1, %s19
    $region7: #{tpu_custom_call.1} parent=1 // loop_footer_branch
      %18 = sbr.rel target = $region3
    $region8: #{tpu_custom_call.1} parent=1 // loop_exit
      _
    %694 = vsyncpa [#allocation4], 1
    %s695 = scalar_lea.sflag [#allocation4], 1
    %696 = vsyncpa %s695, 1
    %697 = vsyncpa [#allocation7], 1
    %s698 = scalar_lea.sflag [#allocation7], 1
    %699 = vsyncpa %s698, 1
    %700 = vsyncpa [#allocation10], 1
    %s701 = scalar_lea.sflag [#allocation10], 1
    %702 = vsyncpa %s701, 1
    %703 = vsyncpa [#allocation5], 1
    %s704 = scalar_lea.sflag [#allocation5], 1
    %705 = vsyncpa %s704, 1

</llo_original>
